<compile_context>
chip_gen: v6e
topology: v6e:2x2x1
jax: 0.10.0
libtpu: 0.0.40
codegen_flags: <defaults>
</compile_context>

<pallas_src>
import math

import jax
import jax.numpy as jnp
from jax import lax
from jax.experimental import pallas as pl
from jax.experimental.pallas import tpu as pltpu

_MIB = 1024 * 1024


# ----------------------------------------------------------------------------
# Hardware / tiling heuristics
# ----------------------------------------------------------------------------
def _device_info():
    """Returns (per-core VMEM capacity bytes, # TensorCores fed by the grid)."""
    vmem_capacity = 64 * _MIB  # conservative default (v7x per-TC VMEM)
    num_cores = 1
    try:
        vmem_capacity = int(pltpu.get_tpu_info().vmem_capacity_bytes)
    except Exception:
        pass
    try:
        kind = jax.devices()[0].device_kind.lower()
        if "v7" in kind:
            num_cores = 2  # dual TensorCore: "parallel" grid axes shard across TCs
    except Exception:
        pass
    return vmem_capacity, num_cores


def _round_up(x, m):
    return ((x + m - 1) // m) * m


def _per_element_vmem_bytes(NA, NB, NK, NV, in_itemsize, out_itemsize):
    """Padded VMEM bytes per batch element across all five pipelined blocks."""
    def in_tile(rows, cols):  # 3-D input blocks: last two dims tile-padded to (8, 128)
        return _round_up(rows, 8) * _round_up(cols, 128) * in_itemsize
    key_b = in_tile(NA, NK)
    qry_b = in_tile(NB, NK)
    val_b = in_tile(NA, NV)
    # 2-D lane-folded output blocks: one padded row per batch element.
    out_b = (_round_up(NB * NV, 128) + _round_up(NB * NA, 128)) * out_itemsize
    return key_b + qry_b + val_b + out_b


def _choose_block_batch(BS, per_elem_bytes, vmem_capacity, num_cores, max_bt=512):
    """Pick (block_batch, need_pad). Big blocks, avoid jnp.pad, respect VMEM."""
    budget = int(0.45 * vmem_capacity)          # leave headroom under the scoped limit
    bt = budget // (2 * per_elem_bytes)         # x2: auto-pipeline double-buffers
    bt = max(1, min(bt, max_bt, BS))
    # Only force multiple grid steps on multi-TC chips; on single-TC v5e/v6e the
    # grid is a serial loop, so one big block is strictly better.
    if num_cores > 1 and BS >= 16:
        bt = min(bt, max(8, BS // num_cores))
    if bt >= BS:
        return BS, False                        # single block (block dim == full dim)
    # Blocked path: the 2-D output specs need the batch block to be a multiple of 8.
    bt = max(8, bt - bt % 8)
    # Prefer a multiple-of-8 divisor of BS so the wrapper never pads (padding is an
    # extra full HBM read+write of every input for a memory-bound kernel).
    d = bt
    while d >= 8:
        if BS % d == 0:
            if 4 * d >= bt:
                return d, False
            break
        d -= 8
    return bt, True


# ----------------------------------------------------------------------------
# Kernel
# ----------------------------------------------------------------------------
def _make_kernel(scale, NB):
    def kernel(k_ref, q_ref, v_ref, vals_ref, w_ref):
        k = k_ref[...]  # [Bt, NA, NK] (native dtype)
        q = q_ref[...]  # [Bt, NB, NK]
        v = v_ref[...]  # [Bt, NA, NV]

        # scores[b, o, a] = (beta / sqrt(NK)) * sum_c q[b, o, c] * k[b, a, c]
        scores = lax.dot_general(
            q, k, (((2,), (2,)), ((0,), (0,))),
            preferred_element_type=jnp.float32) * scale          # [Bt, NB, NA]

        # TODO(synk): drop=True branch (uniform-random -40 masking) not implemented.

        # Softmax over the n_inputs (NA) axis. Exact division: weights are returned
        # and the kernel is HBM-bound, so the exact EUP reciprocal is free.
        m = jnp.max(scores, axis=-1, keepdims=True)               # [Bt, NB, 1]
        e = jnp.exp(scores - m)                                   # [Bt, NB, NA]
        denom = jnp.sum(e, axis=-1, keepdims=True)                # [Bt, NB, 1]
        w = e / denom                                             # [Bt, NB, NA]

        # values[b, o, v] = sum_a w[b, o, a] * value[b, a, v]
        vals = lax.dot_general(
            w.astype(v.dtype), v, (((2,), (1,)), ((0,), (0,))),
            preferred_element_type=jnp.float32)                   # [Bt, NB, NV]

        # TODO(synk): `norm(values)` helper is undefined in the reference; assuming
        # per-row L2 normalization: x / (||x|| + 1e-12) (eps outside the sqrt).
        sumsq = jnp.sum(vals * vals, axis=-1, keepdims=True)      # [Bt, NB, 1]
        nrm = jnp.sqrt(sumsq)
        vals = vals / (nrm + 1e-12)

        # Lane-dense 2-D stores: fold (NB, NV)->NB*NV and (NB, NA)->NB*NA into the
        # lane axis (spelled as a lane concatenation for robust Mosaic lowering).
        vals2d = jnp.concatenate([vals[:, o, :] for o in range(NB)], axis=-1)
        w2d = jnp.concatenate([w[:, o, :] for o in range(NB)], axis=-1)
        vals_ref[...] = vals2d.astype(vals_ref.dtype)             # [Bt, NB*NV]
        w_ref[...] = w2d.astype(w_ref.dtype)                      # [Bt, NB*NA]

    return kernel


# ----------------------------------------------------------------------------
# Wrapper
# ----------------------------------------------------------------------------
def attention_forward(key, query, value, *, drop=False, beta=1.0,
                      block_batch=None, native_layout=False):
    """key: [BS, NA, 1, NK], query: [BS, 1, NB, NK], value: [BS, NA, NV].

    Returns (values [BS, NV, NB], weights [BS, NA, NB], 0) matching the PyTorch
    AttentionLayer.forward (drop=False path). With native_layout=True, returns
    (values [BS, NB, NV], weights [BS, NB, NA], 0) and skips the output-transpose
    HBM pass.
    """
    if drop:
        # TODO(synk): drop=True (uniform-random -40 mask) not implemented.
        raise NotImplementedError("drop=True path is not implemented")

    BS, NA, _, NK = key.shape
    NB = query.shape[2]
    NV = value.shape[2]

    # Squeeze broadcast dims only (metadata-only reshapes, no HBM copy / upcast).
    key3 = key.reshape(BS, NA, NK)
    query3 = query.reshape(BS, NB, NK)
    value3 = value
    out_dtype = query.dtype

    vmem_capacity, num_cores = _device_info()
    per_elem = _per_element_vmem_bytes(
        NA, NB, NK, NV, key.dtype.itemsize, jnp.zeros((), out_dtype).dtype.itemsize)

    if block_batch is None:
        block_batch, need_pad = _choose_block_batch(
            BS, per_elem, vmem_capacity, num_cores)
    else:
        if block_batch < BS and block_batch % 8 != 0:
            raise ValueError("block_batch must be a multiple of 8 (or >= batch size)")
        block_batch = min(block_batch, BS)
        need_pad = (BS % block_batch) != 0

    num_blocks = pl.cdiv(BS, block_batch)
    BSp = num_blocks * block_batch
    if need_pad and BSp != BS:
        # TODO(synk): handle the ragged tail in-kernel (masked last block) instead
        # of padding; this path is only hit when no good divisor block exists.
        pad = BSp - BS
        key3 = jnp.pad(key3, ((0, pad), (0, 0), (0, 0)))
        query3 = jnp.pad(query3, ((0, pad), (0, 0), (0, 0)))
        value3 = jnp.pad(value3, ((0, pad), (0, 0), (0, 0)))

    scale = float(beta) / math.sqrt(NK)
    kernel = _make_kernel(scale, NB)

    out_shapes = (
        jax.ShapeDtypeStruct((BSp, NB * NV), out_dtype),   # folded values
        jax.ShapeDtypeStruct((BSp, NB * NA), out_dtype),   # folded weights
    )

    grid_spec = pl.GridSpec(
        grid=(num_blocks,),
        in_specs=[
            pl.BlockSpec((block_batch, NA, NK), lambda b: (b, 0, 0)),
            pl.BlockSpec((block_batch, NB, NK), lambda b: (b, 0, 0)),
            pl.BlockSpec((block_batch, NA, NV), lambda b: (b, 0, 0)),
        ],
        out_specs=[
            pl.BlockSpec((block_batch, NB * NV), lambda b: (b, 0)),
            pl.BlockSpec((block_batch, NB * NA), lambda b: (b, 0)),
        ],
    )

    # Generation-aware scoped-VMEM limit: enough for double-buffered blocks plus
    # headroom, never above ~85% of physical per-core VMEM.
    needed_vmem = 2 * per_elem * block_batch
    vmem_limit = int(min(0.85 * vmem_capacity,
                         max(needed_vmem + 8 * _MIB, 32 * _MIB)))

    in_isz = key.dtype.itemsize
    out_isz = jnp.zeros((), out_dtype).dtype.itemsize
    cost = pl.CostEstimate(
        flops=int(2 * BS * NB * NA * (NK + NV)),
        transcendentals=int(BS * NB * NA),
        bytes_accessed=int(BS * (NA * NK + NB * NK + NA * NV) * in_isz
                           + BS * (NB * NV + NB * NA) * out_isz))

    vals2d, w2d = pl.pallas_call(
        kernel,
        out_shape=out_shapes,
        grid_spec=grid_spec,
        compiler_params=pltpu.CompilerParams(
            dimension_semantics=("parallel",),
            vmem_limit_bytes=vmem_limit),
        cost_estimate=cost,
    )(key3, query3, value3)

    if BSp != BS:
        vals2d = vals2d[:BS]
        w2d = w2d[:BS]

    # Metadata-only un-fold back to 3-D.
    vals_bov = vals2d.reshape(BS, NB, NV)
    w_boa = w2d.reshape(BS, NB, NA)

    if native_layout:
        # Skip the extra HBM pass of the output transposes (perf feedback) for
        # consumers that accept [BS, NB, NV] / [BS, NB, NA].
        return vals_bov, w_boa, 0

    # Layout plumbing to match the PyTorch module's output contract.
    values = jnp.transpose(vals_bov, (0, 2, 1))   # [BS, NV, NB]
    weights = jnp.transpose(w_boa, (0, 2, 1))     # [BS, NA, NB]
    return values, weights, 0


# ----------------------------------------------------------------------------
# Pure-JAX reference + demo
# ----------------------------------------------------------------------------
def _reference(key, query, value, beta=1.0):
    """Pure-JAX reference matching the PyTorch forward (drop=False)."""
    NK = key.shape[-1]
    w = jnp.sum(key * query, axis=3) / math.sqrt(NK)                    # [BS, NA, NB]
    w = jax.nn.softmax(w * beta, axis=1)
    vals = jnp.sum(w[..., None] * value[:, :, None, :], axis=1)         # [BS, NB, NV]
    nrm = jnp.sqrt(jnp.sum(vals * vals, axis=-1, keepdims=True))
    vals = vals / (nrm + 1e-12)
    vals = jnp.transpose(vals, (0, 2, 1))                               # [BS, NV, NB]
    return vals, w


if __name__ == "__main__":
    # Small shapes consistent with the module: NA = n_inputs, NB = n_outputs,
    # NK = key_size, NV = value_size.
    BS, NA, NB, NK, NV = 2, 16, 8, 32, 32

    rng = jax.random.PRNGKey(0)
    k_key, k_query, k_value = jax.random.split(rng, 3)

    key = jax.random.normal(k_key, (BS, NA, 1, NK), dtype=jnp.float32)
    query = jax.random.normal(k_query, (BS, 1, NB, NK), dtype=jnp.float32)
    value = jax.random.normal(k_value, (BS, NA, NV), dtype=jnp.float32)

    values, weights, idx = attention_forward(key, query, value, beta=1.0)
    jax.block_until_ready((values, weights))

    assert values.shape == (BS, NV, NB)
    assert weights.shape == (BS, NA, NB)
    assert idx == 0

    ref_vals, ref_w = _reference(key, query, value, beta=1.0)
    assert jnp.allclose(values, ref_vals, rtol=2e-2, atol=2e-3)
    assert jnp.allclose(weights, ref_w, rtol=2e-2, atol=2e-3)

    print("KERNEL_OK")
</pallas_src>

<mosaic_0001>
module attributes {stable_mosaic.version = 11 : i64} {
  func.func @kernel(%arg0: i32, %arg1: memref<2x16x32xf32, #tpu.memory_space<vmem>>, %arg2: memref<2x8x32xf32, #tpu.memory_space<vmem>>, %arg3: memref<2x16x32xf32, #tpu.memory_space<vmem>>, %arg4: memref<2x256xf32, #tpu.memory_space<vmem>>, %arg5: memref<2x128xf32, #tpu.memory_space<vmem>>) attributes {dimension_semantics = [#tpu.dimension_semantics<parallel>], iteration_bounds = array<i64: 1>, scalar_prefetch = 0 : i64, scratch_operands = 0 : i64, tpu.core_type = #tpu.core_type<tc>, window_params = [{transform_indices = @transform_0, window_bounds = array<i64: 2, 16, 32>}, {transform_indices = @transform_1, window_bounds = array<i64: 2, 8, 32>}, {transform_indices = @transform_2, window_bounds = array<i64: 2, 16, 32>}, {transform_indices = @transform_3, window_bounds = array<i64: 2, 256>}, {transform_indices = @transform_4, window_bounds = array<i64: 2, 128>}]} {
    %c0 = arith.constant 0 : index
    %c0_0 = arith.constant 0 : index
    %c0_1 = arith.constant 0 : index
    %0 = vector.load %arg1[%c0, %c0_0, %c0_1] : memref<2x16x32xf32, #tpu.memory_space<vmem>>, vector<2x16x32xf32>
    %c0_2 = arith.constant 0 : index
    %c0_3 = arith.constant 0 : index
    %c0_4 = arith.constant 0 : index
    %1 = vector.load %arg2[%c0_2, %c0_3, %c0_4] : memref<2x8x32xf32, #tpu.memory_space<vmem>>, vector<2x8x32xf32>
    %c0_5 = arith.constant 0 : index
    %c0_6 = arith.constant 0 : index
    %c0_7 = arith.constant 0 : index
    %2 = vector.load %arg3[%c0_5, %c0_6, %c0_7] : memref<2x16x32xf32, #tpu.memory_space<vmem>>, vector<2x16x32xf32>
    %cst = arith.constant dense<0.000000e+00> : vector<2x8x16xf32>
    %3 = tpu.matmul %1, %0, %cst {dimension_numbers = #tpu.dot_dimension_numbers<[2], [2], [1], [1], [0, 0, 0, 1, 1, 1], [0], [0]>} : vector<2x8x32xf32>, vector<2x16x32xf32>, vector<2x8x16xf32> -> vector<2x8x16xf32>
    %cst_8 = arith.constant 0.176776692 : f32
    %4 = vector.broadcast %cst_8 : f32 to vector<2x8x16xf32>
    %5 = arith.mulf %3, %4 : vector<2x8x16xf32>
    %cst_9 = arith.constant dense<0xFF800000> : vector<2x8xf32>
    %6 = vector.multi_reduction <maximumf>, %5, %cst_9 [2] : vector<2x8x16xf32> to vector<2x8xf32>
    %7 = vector.shape_cast %6 : vector<2x8xf32> to vector<2x8x1xf32>
    %8 = vector.broadcast %7 : vector<2x8x1xf32> to vector<2x8x16xf32>
    %9 = arith.subf %5, %8 : vector<2x8x16xf32>
    %10 = math.exp %9 : vector<2x8x16xf32>
    %cst_10 = arith.constant dense<0.000000e+00> : vector<2x8xf32>
    %11 = vector.multi_reduction <add>, %10, %cst_10 [2] : vector<2x8x16xf32> to vector<2x8xf32>
    %12 = vector.shape_cast %11 : vector<2x8xf32> to vector<2x8x1xf32>
    %13 = vector.broadcast %12 : vector<2x8x1xf32> to vector<2x8x16xf32>
    %14 = arith.divf %10, %13 : vector<2x8x16xf32>
    %cst_11 = arith.constant dense<0.000000e+00> : vector<2x8x32xf32>
    %15 = tpu.matmul %14, %2, %cst_11 {dimension_numbers = #tpu.dot_dimension_numbers<[2], [1], [1], [2], [0, 0, 0, 1, 1, 2], [0], [0]>} : vector<2x8x16xf32>, vector<2x16x32xf32>, vector<2x8x32xf32> -> vector<2x8x32xf32>
    %16 = arith.mulf %15, %15 : vector<2x8x32xf32>
    %cst_12 = arith.constant dense<0.000000e+00> : vector<2x8xf32>
    %17 = vector.multi_reduction <add>, %16, %cst_12 [2] : vector<2x8x32xf32> to vector<2x8xf32>
    %18 = vector.shape_cast %17 : vector<2x8xf32> to vector<2x8x1xf32>
    %19 = math.sqrt %18 : vector<2x8x1xf32>
    %cst_13 = arith.constant 9.99999996E-13 : f32
    %20 = vector.broadcast %cst_13 : f32 to vector<2x8x1xf32>
    %21 = arith.addf %19, %20 : vector<2x8x1xf32>
    %22 = vector.broadcast %21 : vector<2x8x1xf32> to vector<2x8x32xf32>
    %23 = arith.divf %15, %22 : vector<2x8x32xf32>
    %24 = vector.extract_strided_slice %23 {offsets = [0, 0, 0], sizes = [2, 1, 32], strides = [1, 1, 1]} : vector<2x8x32xf32> to vector<2x1x32xf32>
    %25 = vector.shape_cast %24 : vector<2x1x32xf32> to vector<2x32xf32>
    %26 = vector.extract_strided_slice %23 {offsets = [0, 1, 0], sizes = [2, 1, 32], strides = [1, 1, 1]} : vector<2x8x32xf32> to vector<2x1x32xf32>
    %27 = vector.shape_cast %26 : vector<2x1x32xf32> to vector<2x32xf32>
    %28 = vector.extract_strided_slice %23 {offsets = [0, 2, 0], sizes = [2, 1, 32], strides = [1, 1, 1]} : vector<2x8x32xf32> to vector<2x1x32xf32>
    %29 = vector.shape_cast %28 : vector<2x1x32xf32> to vector<2x32xf32>
    %30 = vector.extract_strided_slice %23 {offsets = [0, 3, 0], sizes = [2, 1, 32], strides = [1, 1, 1]} : vector<2x8x32xf32> to vector<2x1x32xf32>
    %31 = vector.shape_cast %30 : vector<2x1x32xf32> to vector<2x32xf32>
    %32 = vector.extract_strided_slice %23 {offsets = [0, 4, 0], sizes = [2, 1, 32], strides = [1, 1, 1]} : vector<2x8x32xf32> to vector<2x1x32xf32>
    %33 = vector.shape_cast %32 : vector<2x1x32xf32> to vector<2x32xf32>
    %34 = vector.extract_strided_slice %23 {offsets = [0, 5, 0], sizes = [2, 1, 32], strides = [1, 1, 1]} : vector<2x8x32xf32> to vector<2x1x32xf32>
    %35 = vector.shape_cast %34 : vector<2x1x32xf32> to vector<2x32xf32>
    %36 = vector.extract_strided_slice %23 {offsets = [0, 6, 0], sizes = [2, 1, 32], strides = [1, 1, 1]} : vector<2x8x32xf32> to vector<2x1x32xf32>
    %37 = vector.shape_cast %36 : vector<2x1x32xf32> to vector<2x32xf32>
    %38 = vector.extract_strided_slice %23 {offsets = [0, 7, 0], sizes = [2, 1, 32], strides = [1, 1, 1]} : vector<2x8x32xf32> to vector<2x1x32xf32>
    %39 = vector.shape_cast %38 : vector<2x1x32xf32> to vector<2x32xf32>
    %40 = tpu.concatenate %25, %27, %29, %31, %33, %35, %37, %39 in 1 : vector<2x32xf32>, vector<2x32xf32>, vector<2x32xf32>, vector<2x32xf32>, vector<2x32xf32>, vector<2x32xf32>, vector<2x32xf32>, vector<2x32xf32> -> vector<2x256xf32>
    %41 = vector.extract_strided_slice %14 {offsets = [0, 0, 0], sizes = [2, 1, 16], strides = [1, 1, 1]} : vector<2x8x16xf32> to vector<2x1x16xf32>
    %42 = vector.shape_cast %41 : vector<2x1x16xf32> to vector<2x16xf32>
    %43 = vector.extract_strided_slice %14 {offsets = [0, 1, 0], sizes = [2, 1, 16], strides = [1, 1, 1]} : vector<2x8x16xf32> to vector<2x1x16xf32>
    %44 = vector.shape_cast %43 : vector<2x1x16xf32> to vector<2x16xf32>
    %45 = vector.extract_strided_slice %14 {offsets = [0, 2, 0], sizes = [2, 1, 16], strides = [1, 1, 1]} : vector<2x8x16xf32> to vector<2x1x16xf32>
    %46 = vector.shape_cast %45 : vector<2x1x16xf32> to vector<2x16xf32>
    %47 = vector.extract_strided_slice %14 {offsets = [0, 3, 0], sizes = [2, 1, 16], strides = [1, 1, 1]} : vector<2x8x16xf32> to vector<2x1x16xf32>
    %48 = vector.shape_cast %47 : vector<2x1x16xf32> to vector<2x16xf32>
    %49 = vector.extract_strided_slice %14 {offsets = [0, 4, 0], sizes = [2, 1, 16], strides = [1, 1, 1]} : vector<2x8x16xf32> to vector<2x1x16xf32>
    %50 = vector.shape_cast %49 : vector<2x1x16xf32> to vector<2x16xf32>
    %51 = vector.extract_strided_slice %14 {offsets = [0, 5, 0], sizes = [2, 1, 16], strides = [1, 1, 1]} : vector<2x8x16xf32> to vector<2x1x16xf32>
    %52 = vector.shape_cast %51 : vector<2x1x16xf32> to vector<2x16xf32>
    %53 = vector.extract_strided_slice %14 {offsets = [0, 6, 0], sizes = [2, 1, 16], strides = [1, 1, 1]} : vector<2x8x16xf32> to vector<2x1x16xf32>
    %54 = vector.shape_cast %53 : vector<2x1x16xf32> to vector<2x16xf32>
    %55 = vector.extract_strided_slice %14 {offsets = [0, 7, 0], sizes = [2, 1, 16], strides = [1, 1, 1]} : vector<2x8x16xf32> to vector<2x1x16xf32>
    %56 = vector.shape_cast %55 : vector<2x1x16xf32> to vector<2x16xf32>
    %57 = tpu.concatenate %42, %44, %46, %48, %50, %52, %54, %56 in 1 : vector<2x16xf32>, vector<2x16xf32>, vector<2x16xf32>, vector<2x16xf32>, vector<2x16xf32>, vector<2x16xf32>, vector<2x16xf32>, vector<2x16xf32> -> vector<2x128xf32>
    %c0_14 = arith.constant 0 : index
    %c0_15 = arith.constant 0 : index
    %58 = vector.load %arg4[%c0_14, %c0_15] : memref<2x256xf32, #tpu.memory_space<vmem>>, vector<2x256xf32>
    tpu.vector_store %arg4[%c0_14, %c0_15], %40 {strides = array<i32>} : memref<2x256xf32, #tpu.memory_space<vmem>>, vector<2x256xf32>,
    %c0_16 = arith.constant 0 : index
    %c0_17 = arith.constant 0 : index
    %59 = vector.load %arg5[%c0_16, %c0_17] : memref<2x128xf32, #tpu.memory_space<vmem>>, vector<2x128xf32>
    tpu.vector_store %arg5[%c0_16, %c0_17], %57 {strides = array<i32>} : memref<2x128xf32, #tpu.memory_space<vmem>>, vector<2x128xf32>,
    return
  }
  func.func @transform_0(%arg0: i32) -> (i32, i32, i32) {
    %c0_i32 = arith.constant 0 : i32
    %c0_i32_0 = arith.constant 0 : i32
    %c0_i32_1 = arith.constant 0 : i32
    return %arg0, %c0_i32, %c0_i32_0 : i32, i32, i32
  }
  func.func @transform_1(%arg0: i32) -> (i32, i32, i32) {
    %c0_i32 = arith.constant 0 : i32
    %c0_i32_0 = arith.constant 0 : i32
    %c0_i32_1 = arith.constant 0 : i32
    return %arg0, %c0_i32, %c0_i32_0 : i32, i32, i32
  }
  func.func @transform_2(%arg0: i32) -> (i32, i32, i32) {
    %c0_i32 = arith.constant 0 : i32
    %c0_i32_0 = arith.constant 0 : i32
    %c0_i32_1 = arith.constant 0 : i32
    return %arg0, %c0_i32, %c0_i32_0 : i32, i32, i32
  }
  func.func @transform_3(%arg0: i32) -> (i32, i32) {
    %c0_i32 = arith.constant 0 : i32
    %c0_i32_0 = arith.constant 0 : i32
    return %arg0, %c0_i32 : i32, i32
  }
  func.func @transform_4(%arg0: i32) -> (i32, i32) {
    %c0_i32 = arith.constant 0 : i32
    %c0_i32_0 = arith.constant 0 : i32
    return %arg0, %c0_i32 : i32, i32
  }
}

</mosaic_0001>

<llo_original>
// kernel: tpu_custom_call.1
$region0: #{tpu_custom_call.1}
  #allocation0 [shape = 'u32[]', space=smem, size = 0x4, offset = 0x4, fixed_abs, tag = 'smem constant byte address 0x4 - core index']
  #allocation1 [shape = 'u32[144,128]{1,0:T(1,128)}', space=vmem, size = 0x12000, scoped, tag = 'internal scratch']
  %s0 = inlined_call_operand.hbm [shape: f32[2,16,32], index: 0, kind: input, shape index: {}]
  %s1 = inlined_call_operand.hbm [shape: f32[2,8,32], index: 1, kind: input, shape index: {}]
  %s2 = inlined_call_operand.hbm [shape: f32[2,16,32], index: 2, kind: input, shape index: {}]
  %s3 = inlined_call_operand.hbm [shape: f32[2,256], index: 3, kind: output, shape index: {0}]
  %s4 = inlined_call_operand.hbm [shape: f32[2,128], index: 4, kind: output, shape index: {1}]
  %5 = xla_tuple %s3, %s4
  %s6 = sld [smem:[#allocation0]]
  $region42: #{tpu_custom_call.1} parent=0
    _
  %s8 = ssub.s32 1, %s6
  %s9 = scalar_select 0, %s8, %s6
  $region1: #{tpu_custom_call.1} parent=0
    #allocation2 [shape = 'u8[16384]{0}', space=vmem, size = 0x4000, scoped, tag = 'input window, operand 0, single buffered']
    #allocation3 [shape = 's32[1]{0}', space=sflag, size = 0x4, scoped, tag = 'scoped memory for tpu_custom_call.1']
    #allocation4 [shape = 's32[1]{0}', space=sflag, size = 0x4, scoped, tag = 'scoped memory for tpu_custom_call.1']
    #allocation5 [shape = 'u8[8192]{0}', space=vmem, size = 0x2000, scoped, tag = 'input window, operand 1, single buffered']
    #allocation6 [shape = 's32[1]{0}', space=sflag, size = 0x4, scoped, tag = 'scoped memory for tpu_custom_call.1']
    #allocation7 [shape = 'u8[16384]{0}', space=vmem, size = 0x4000, scoped, tag = 'input window, operand 2, single buffered']
    #allocation8 [shape = 'u8[2048]{0}', space=vmem, size = 0x800, scoped, tag = 'output window, operand 0, single buffered']
    #allocation9 [shape = 'u8[1024]{0}', space=vmem, size = 0x400, scoped, tag = 'output window, operand 1, single buffered']
    #allocation10 [shape = 's32[1]{0}', space=sflag, size = 0x4, scoped, tag = 'scoped memory for tpu_custom_call.1']
    %10 = vsyncpa [#allocation3], 0
    %11 = vsyncpa [#allocation6], 0
    %12 = vsyncpa [#allocation4], 0
    %13 = vsyncpa [#allocation10], 0
    // Predicated region
    $region2: #{tpu_custom_call.1} parent=1 // pred_check
      _
    $region3: #{tpu_custom_call.1} parent=1 // pred_check_branch
      %15 = sbr.rel (0) target = $region5
    $region4: #{tpu_custom_call.1} parent=1 // pred_region
      %s17 = ssub.s32 512, 512
      %18 = vsyncadd [#allocation3], %s17
      %s19 = sshll.u32 [#allocation2], 4
      %s20 = int_to_ptr.vmem [resolvable:$true] %s19
      %25 = dma.hbm_to_vmem [thread:$0]  %s0, 512, %s20, [#allocation3], 128, 128, 8
    $region5: #{tpu_custom_call.1} parent=1 // pred_fallthru
      _
    // Predicated region
    $region6: #{tpu_custom_call.1} parent=1 // pred_check
      _
    $region7: #{tpu_custom_call.1} parent=1 // pred_check_branch
      %27 = sbr.rel (0) target = $region9
    $region8: #{tpu_custom_call.1} parent=1 // pred_region
      %s29 = ssub.s32 256, 256
      %30 = vsyncadd [#allocation6], %s29
      %s31 = sshll.u32 [#allocation5], 4
      %s32 = int_to_ptr.vmem [resolvable:$true] %s31
      %37 = dma.hbm_to_vmem [thread:$0]  %s1, 256, %s32, [#allocation6], 128, 128, 8
    $region9: #{tpu_custom_call.1} parent=1 // pred_fallthru
      _
    // Predicated region
    $region10: #{tpu_custom_call.1} parent=1 // pred_check
      _
    $region11: #{tpu_custom_call.1} parent=1 // pred_check_branch
      %39 = sbr.rel (0) target = $region13
    $region12: #{tpu_custom_call.1} parent=1 // pred_region
      %s41 = ssub.s32 512, 512
      %42 = vsyncadd [#allocation6], %s41
      %s43 = sshll.u32 [#allocation7], 4
      %s44 = int_to_ptr.vmem [resolvable:$true] %s43
      %49 = dma.hbm_to_vmem [thread:$0]  %s2, 512, %s44, [#allocation6], 128, 128, 8
    $region13: #{tpu_custom_call.1} parent=1 // pred_fallthru
      _
    // Predicated region
    $region14: #{tpu_custom_call.1} parent=1 // pred_check
      _
    $region15: #{tpu_custom_call.1} parent=1 // pred_check_branch
      %51 = sbr.rel (0) target = $region17
    $region16: #{tpu_custom_call.1} parent=1 // pred_region
      %52 = dma.done [#allocation3], 512
    $region17: #{tpu_custom_call.1} parent=1 // pred_fallthru
      _
    // Predicated region
    $region18: #{tpu_custom_call.1} parent=1 // pred_check
      _
    $region19: #{tpu_custom_call.1} parent=1 // pred_check_branch
      %54 = sbr.rel (0) target = $region21
    $region20: #{tpu_custom_call.1} parent=1 // pred_region
      %55 = dma.done [#allocation6], 256
    $region21: #{tpu_custom_call.1} parent=1 // pred_fallthru
      _
    // Predicated region
    $region22: #{tpu_custom_call.1} parent=1 // pred_check
      _
    $region23: #{tpu_custom_call.1} parent=1 // pred_check_branch
      %57 = sbr.rel (0) target = $region25
    $region24: #{tpu_custom_call.1} parent=1 // pred_region
      %58 = dma.done [#allocation6], 512
    $region25: #{tpu_custom_call.1} parent=1 // pred_fallthru
      _
    %v59 = vld [vmem:[#allocation2] sm:$0xff]
    %v60 = vld [vmem:[#allocation2 + $0x8] sm:$0xff]
    %v61 = vld [vmem:[#allocation2 + $0x10] sm:$0xff]
    %v62 = vld [vmem:[#allocation2 + $0x18] sm:$0xff]
    %v63 = vld [vmem:[#allocation5] sm:$0xff]
    %v64 = vld [vmem:[#allocation5 + $0x8] sm:$0xff]
    %v65 = vld [vmem:[#allocation7] sm:$0xff]
    %v66 = vld [vmem:[#allocation7 + $0x8] sm:$0xff]
    %v67 = vld [vmem:[#allocation7 + $0x10] sm:$0xff]
    %v68 = vld [vmem:[#allocation7 + $0x18] sm:$0xff]
    %vm69 = vcmask 261120
    %v71 = vsel %vm69, %v63, 0
    %v74 = vsel %vm69, %v59, 0
    %v77 = vsel %vm69, %v60, 0
    %79 = vmatprep.subr.mxu0 0.0
    %80 = vmatpush1.xpose.msra.mxu0 0.0
    %81 = vmatprep.subr.mxu0 0.0
    %82 = vmatpush1.xpose.msra.mxu0 0.0
    %83 = vmatprep.subr.mxu0 0.0
    %84 = vmatpush1.xpose.msra.mxu0 0.0
    %85 = vmatprep.subr.mxu0 0.0
    %86 = vmatpush1.xpose.msra.mxu0 0.0
    %87 = vmatprep.subr.mxu0 0.0
    %88 = vmatpush1.xpose.msra.mxu0 0.0
    %89 = vmatprep.subr.mxu0 0.0
    %90 = vmatpush1.xpose.msra.mxu0 0.0
    %91 = vmatprep.subr.mxu0 0.0
    %92 = vmatpush1.xpose.msra.mxu0 0.0
    %93 = vmatprep.subr.mxu0 0.0
    %94 = vmatpush1.xpose.msra.mxu0 0.0
    %95 = vmatprep.subr.mxu0 0.0
    %96 = vmatpush1.xpose.msra.mxu0 0.0
    %97 = vmatprep.subr.mxu0 0.0
    %98 = vmatpush1.xpose.msra.mxu0 0.0
    %99 = vmatprep.subr.mxu0 0.0
    %100 = vmatpush1.xpose.msra.mxu0 0.0
    %101 = vmatprep.subr.mxu0 0.0
    %102 = vmatpush1.xpose.msra.mxu0 0.0
    %103 = vmatprep.subr.mxu0 0.0
    %104 = vmatpush1.xpose.msra.mxu0 0.0
    %105 = vmatprep.subr.mxu0 0.0
    %106 = vmatpush1.xpose.msra.mxu0 0.0
    %107 = vmatprep.subr.mxu0 0.0
    %108 = vmatpush1.xpose.msra.mxu0 %v77
    %109 = vmatprep.subr.mxu0 0.0
    %110 = vmatpush1.xpose.msra.mxu0 %v74
    %111 = vmatprep.subr.mxu0 0.0
    %112 = vmatpush2.xpose.msra.mxu0 0.0
    %113 = vmatprep.subr.mxu0 0.0
    %114 = vmatpush2.xpose.msra.mxu0 0.0
    %115 = vmatprep.subr.mxu0 0.0
    %116 = vmatpush2.xpose.msra.mxu0 0.0
    %117 = vmatprep.subr.mxu0 0.0
    %118 = vmatpush2.xpose.msra.mxu0 0.0
    %119 = vmatprep.subr.mxu0 0.0
    %120 = vmatpush2.xpose.msra.mxu0 0.0
    %121 = vmatprep.subr.mxu0 0.0
    %122 = vmatpush2.xpose.msra.mxu0 0.0
    %123 = vmatprep.subr.mxu0 0.0
    %124 = vmatpush2.xpose.msra.mxu0 0.0
    %125 = vmatprep.subr.mxu0 0.0
    %126 = vmatpush2.xpose.msra.mxu0 0.0
    %127 = vmatprep.subr.mxu0 0.0
    %128 = vmatpush2.xpose.msra.mxu0 0.0
    %129 = vmatprep.subr.mxu0 0.0
    %130 = vmatpush2.xpose.msra.mxu0 0.0
    %131 = vmatprep.subr.mxu0 0.0
    %132 = vmatpush2.xpose.msra.mxu0 0.0
    %133 = vmatprep.subr.mxu0 0.0
    %134 = vmatpush2.xpose.msra.mxu0 0.0
    %135 = vmatprep.subr.mxu0 0.0
    %136 = vmatpush2.xpose.msra.mxu0 0.0
    %137 = vmatprep.subr.mxu0 0.0
    %138 = vmatpush2.xpose.msra.mxu0 0.0
    %139 = vmatprep.subr.mxu0 0.0
    %140 = vmatpush2.xpose.msra.mxu0 0.0
    %141 = vmatprep.subr.mxu0 0.0
    %142 = vmatpush2.xpose.msra.mxu0 0.0
    %143 = vmatprep.mubr.f32.mxu0 0.0
    %144 = vmatmul.mubr.f32.gmra.mxu0 %v71
    %v145 = vpop.f32.mrf.mxu0
    %v146 = vadd.f32 0.0, %v145
    %v147 = vpop.f32.mrf.mxu0
    %148 = vdwg.mxu0
    %v150 = vsel %vm69, %v64, 0
    %v153 = vsel %vm69, %v61, 0
    %v156 = vsel %vm69, %v62, 0
    %158 = vmatprep.subr.mxu0 0.0
    %159 = vmatpush1.xpose.msra.mxu0 0.0
    %160 = vmatprep.subr.mxu0 0.0
    %161 = vmatpush1.xpose.msra.mxu0 0.0
    %162 = vmatprep.subr.mxu0 0.0
    %163 = vmatpush1.xpose.msra.mxu0 0.0
    %164 = vmatprep.subr.mxu0 0.0
    %165 = vmatpush1.xpose.msra.mxu0 0.0
    %166 = vmatprep.subr.mxu0 0.0
    %167 = vmatpush1.xpose.msra.mxu0 0.0
    %168 = vmatprep.subr.mxu0 0.0
    %169 = vmatpush1.xpose.msra.mxu0 0.0
    %170 = vmatprep.subr.mxu0 0.0
    %171 = vmatpush1.xpose.msra.mxu0 0.0
    %172 = vmatprep.subr.mxu0 0.0
    %173 = vmatpush1.xpose.msra.mxu0 0.0
    %174 = vmatprep.subr.mxu0 0.0
    %175 = vmatpush1.xpose.msra.mxu0 0.0
    %176 = vmatprep.subr.mxu0 0.0
    %177 = vmatpush1.xpose.msra.mxu0 0.0
    %178 = vmatprep.subr.mxu0 0.0
    %179 = vmatpush1.xpose.msra.mxu0 0.0
    %180 = vmatprep.subr.mxu0 0.0
    %181 = vmatpush1.xpose.msra.mxu0 0.0
    %182 = vmatprep.subr.mxu0 0.0
    %183 = vmatpush1.xpose.msra.mxu0 0.0
    %184 = vmatprep.subr.mxu0 0.0
    %185 = vmatpush1.xpose.msra.mxu0 0.0
    %186 = vmatprep.subr.mxu0 0.0
    %187 = vmatpush1.xpose.msra.mxu0 %v156
    %188 = vmatprep.subr.mxu0 0.0
    %189 = vmatpush1.xpose.msra.mxu0 %v153
    %190 = vmatprep.subr.mxu0 0.0
    %191 = vmatpush2.xpose.msra.mxu0 0.0
    %192 = vmatprep.subr.mxu0 0.0
    %193 = vmatpush2.xpose.msra.mxu0 0.0
    %194 = vmatprep.subr.mxu0 0.0
    %195 = vmatpush2.xpose.msra.mxu0 0.0
    %196 = vmatprep.subr.mxu0 0.0
    %197 = vmatpush2.xpose.msra.mxu0 0.0
    %198 = vmatprep.subr.mxu0 0.0
    %199 = vmatpush2.xpose.msra.mxu0 0.0
    %200 = vmatprep.subr.mxu0 0.0
    %201 = vmatpush2.xpose.msra.mxu0 0.0
    %202 = vmatprep.subr.mxu0 0.0
    %203 = vmatpush2.xpose.msra.mxu0 0.0
    %204 = vmatprep.subr.mxu0 0.0
    %205 = vmatpush2.xpose.msra.mxu0 0.0
    %206 = vmatprep.subr.mxu0 0.0
    %207 = vmatpush2.xpose.msra.mxu0 0.0
    %208 = vmatprep.subr.mxu0 0.0
    %209 = vmatpush2.xpose.msra.mxu0 0.0
    %210 = vmatprep.subr.mxu0 0.0
    %211 = vmatpush2.xpose.msra.mxu0 0.0
    %212 = vmatprep.subr.mxu0 0.0
    %213 = vmatpush2.xpose.msra.mxu0 0.0
    %214 = vmatprep.subr.mxu0 0.0
    %215 = vmatpush2.xpose.msra.mxu0 0.0
    %216 = vmatprep.subr.mxu0 0.0
    %217 = vmatpush2.xpose.msra.mxu0 0.0
    %218 = vmatprep.subr.mxu0 0.0
    %219 = vmatpush2.xpose.msra.mxu0 0.0
    %220 = vmatprep.subr.mxu0 0.0
    %221 = vmatpush2.xpose.msra.mxu0 0.0
    %222 = vmatprep.mubr.f32.mxu0 0.0
    %223 = vmatmul.mubr.f32.gmra.mxu0 %v150
    %v224 = vpop.f32.mrf.mxu0
    %v225 = vadd.f32 0.0, %v224
    %v226 = vpop.f32.mrf.mxu0
    %227 = vdwg.mxu0
    %v228 = vmul.f32 %v146, 0.17677669
    %v229 = vmul.f32 %v225, 0.17677669
    %vm230 = vcmask 130048
    %v231 = vsel %vm230, %v228, -inf
    %232 = vmax.xlane.f32.xlu0 %v231
    %v233 = vpop.xlane.xlu0 %232
    %v234 = vsel %vm230, %v229, -inf
    %235 = vmax.xlane.f32.xlu0 %v234
    %v236 = vpop.xlane.xlu0 %235
    %v237 = vsub.f32 %v228, %v233
    %v238 = vsub.f32 %v229, %v236
    %v239 = vmul.f32 %v237, 1.442695
    %v240 = vpow.pop %v239
    %v241 = vmul.f32 %v238, 1.442695
    %v242 = vpow.pop %v241
    %v243 = vsel %vm230, %v240, 0.0
    %244 = vadd.xlane.f32.xlu0 %v243
    %v245 = vpop.xlane.xlu0 %244
    %v246 = vsel %vm230, %v242, 0.0
    %247 = vadd.xlane.f32.xlu0 %v246
    %v248 = vpop.xlane.xlu0 %247
    %v249 = vrcp.pop %v245
    %v250 = vmul.f32 %v240, %v249
    %v251 = vrcp.pop %v248
    %v252 = vmul.f32 %v242, %v251
    %v254 = vsel %vm230, %v250, 0
    %256 = vmatprep.subr.mxu0 0.0
    %257 = vmatpush1.msra.mxu0 0.0
    %258 = vmatprep.subr.mxu0 0.0
    %259 = vmatpush1.msra.mxu0 0.0
    %260 = vmatprep.subr.mxu0 0.0
    %261 = vmatpush1.msra.mxu0 0.0
    %262 = vmatprep.subr.mxu0 0.0
    %263 = vmatpush1.msra.mxu0 0.0
    %264 = vmatprep.subr.mxu0 0.0
    %265 = vmatpush1.msra.mxu0 0.0
    %266 = vmatprep.subr.mxu0 0.0
    %267 = vmatpush1.msra.mxu0 0.0
    %268 = vmatprep.subr.mxu0 0.0
    %269 = vmatpush1.msra.mxu0 0.0
    %270 = vmatprep.subr.mxu0 0.0
    %271 = vmatpush1.msra.mxu0 0.0
    %272 = vmatprep.subr.mxu0 0.0
    %273 = vmatpush1.msra.mxu0 0.0
    %274 = vmatprep.subr.mxu0 0.0
    %275 = vmatpush1.msra.mxu0 0.0
    %276 = vmatprep.subr.mxu0 0.0
    %277 = vmatpush1.msra.mxu0 0.0
    %278 = vmatprep.subr.mxu0 0.0
    %279 = vmatpush1.msra.mxu0 0.0
    %280 = vmatprep.subr.mxu0 0.0
    %281 = vmatpush1.msra.mxu0 0.0
    %282 = vmatprep.subr.mxu0 0.0
    %283 = vmatpush1.msra.mxu0 0.0
    %284 = vmatprep.subr.mxu0 0.0
    %285 = vmatpush1.msra.mxu0 %v66
    %286 = vmatprep.subr.mxu0 0.0
    %287 = vmatpush1.msra.mxu0 %v65
    %288 = vmatprep.subr.mxu0 0.0
    %289 = vmatpush2.msra.mxu0 0.0
    %290 = vmatprep.subr.mxu0 0.0
    %291 = vmatpush2.msra.mxu0 0.0
    %292 = vmatprep.subr.mxu0 0.0
    %293 = vmatpush2.msra.mxu0 0.0
    %294 = vmatprep.subr.mxu0 0.0
    %295 = vmatpush2.msra.mxu0 0.0
    %296 = vmatprep.subr.mxu0 0.0
    %297 = vmatpush2.msra.mxu0 0.0
    %298 = vmatprep.subr.mxu0 0.0
    %299 = vmatpush2.msra.mxu0 0.0
    %300 = vmatprep.subr.mxu0 0.0
    %301 = vmatpush2.msra.mxu0 0.0
    %302 = vmatprep.subr.mxu0 0.0
    %303 = vmatpush2.msra.mxu0 0.0
    %304 = vmatprep.subr.mxu0 0.0
    %305 = vmatpush2.msra.mxu0 0.0
    %306 = vmatprep.subr.mxu0 0.0
    %307 = vmatpush2.msra.mxu0 0.0
    %308 = vmatprep.subr.mxu0 0.0
    %309 = vmatpush2.msra.mxu0 0.0
    %310 = vmatprep.subr.mxu0 0.0
    %311 = vmatpush2.msra.mxu0 0.0
    %312 = vmatprep.subr.mxu0 0.0
    %313 = vmatpush2.msra.mxu0 0.0
    %314 = vmatprep.subr.mxu0 0.0
    %315 = vmatpush2.msra.mxu0 0.0
    %316 = vmatprep.subr.mxu0 0.0
    %317 = vmatpush2.msra.mxu0 0.0
    %318 = vmatprep.subr.mxu0 0.0
    %319 = vmatpush2.msra.mxu0 0.0
    %320 = vmatprep.mubr.f32.mxu0 0.0
    %321 = vmatmul.mubr.f32.gmra.mxu0 %v254
    %v322 = vpop.f32.mrf.mxu0
    %v323 = vadd.f32 0.0, %v322
    %v324 = vpop.f32.mrf.mxu0
    %325 = vdwg.mxu0
    %v327 = vsel %vm230, %v252, 0
    %329 = vmatprep.subr.mxu0 0.0
    %330 = vmatpush1.msra.mxu0 0.0
    %331 = vmatprep.subr.mxu0 0.0
    %332 = vmatpush1.msra.mxu0 0.0
    %333 = vmatprep.subr.mxu0 0.0
    %334 = vmatpush1.msra.mxu0 0.0
    %335 = vmatprep.subr.mxu0 0.0
    %336 = vmatpush1.msra.mxu0 0.0
    %337 = vmatprep.subr.mxu0 0.0
    %338 = vmatpush1.msra.mxu0 0.0
    %339 = vmatprep.subr.mxu0 0.0
    %340 = vmatpush1.msra.mxu0 0.0
    %341 = vmatprep.subr.mxu0 0.0
    %342 = vmatpush1.msra.mxu0 0.0
    %343 = vmatprep.subr.mxu0 0.0
    %344 = vmatpush1.msra.mxu0 0.0
    %345 = vmatprep.subr.mxu0 0.0
    %346 = vmatpush1.msra.mxu0 0.0
    %347 = vmatprep.subr.mxu0 0.0
    %348 = vmatpush1.msra.mxu0 0.0
    %349 = vmatprep.subr.mxu0 0.0
    %350 = vmatpush1.msra.mxu0 0.0
    %351 = vmatprep.subr.mxu0 0.0
    %352 = vmatpush1.msra.mxu0 0.0
    %353 = vmatprep.subr.mxu0 0.0
    %354 = vmatpush1.msra.mxu0 0.0
    %355 = vmatprep.subr.mxu0 0.0
    %356 = vmatpush1.msra.mxu0 0.0
    %357 = vmatprep.subr.mxu0 0.0
    %358 = vmatpush1.msra.mxu0 %v68
    %359 = vmatprep.subr.mxu0 0.0
    %360 = vmatpush1.msra.mxu0 %v67
    %361 = vmatprep.subr.mxu0 0.0
    %362 = vmatpush2.msra.mxu0 0.0
    %363 = vmatprep.subr.mxu0 0.0
    %364 = vmatpush2.msra.mxu0 0.0
    %365 = vmatprep.subr.mxu0 0.0
    %366 = vmatpush2.msra.mxu0 0.0
    %367 = vmatprep.subr.mxu0 0.0
    %368 = vmatpush2.msra.mxu0 0.0
    %369 = vmatprep.subr.mxu0 0.0
    %370 = vmatpush2.msra.mxu0 0.0
    %371 = vmatprep.subr.mxu0 0.0
    %372 = vmatpush2.msra.mxu0 0.0
    %373 = vmatprep.subr.mxu0 0.0
    %374 = vmatpush2.msra.mxu0 0.0
    %375 = vmatprep.subr.mxu0 0.0
    %376 = vmatpush2.msra.mxu0 0.0
    %377 = vmatprep.subr.mxu0 0.0
    %378 = vmatpush2.msra.mxu0 0.0
    %379 = vmatprep.subr.mxu0 0.0
    %380 = vmatpush2.msra.mxu0 0.0
    %381 = vmatprep.subr.mxu0 0.0
    %382 = vmatpush2.msra.mxu0 0.0
    %383 = vmatprep.subr.mxu0 0.0
    %384 = vmatpush2.msra.mxu0 0.0
    %385 = vmatprep.subr.mxu0 0.0
    %386 = vmatpush2.msra.mxu0 0.0
    %387 = vmatprep.subr.mxu0 0.0
    %388 = vmatpush2.msra.mxu0 0.0
    %389 = vmatprep.subr.mxu0 0.0
    %390 = vmatpush2.msra.mxu0 0.0
    %391 = vmatprep.subr.mxu0 0.0
    %392 = vmatpush2.msra.mxu0 0.0
    %393 = vmatprep.mubr.f32.mxu0 0.0
    %394 = vmatmul.mubr.f32.gmra.mxu0 %v327
    %v395 = vpop.f32.mrf.mxu0
    %v396 = vadd.f32 0.0, %v395
    %v397 = vpop.f32.mrf.mxu0
    %398 = vdwg.mxu0
    %v399 = vmul.f32 %v323, %v323
    %v400 = vmul.f32 %v396, %v396
    %v401 = vsel %vm69, %v399, 0.0
    %402 = vadd.xlane.f32.xlu0 %v401
    %v403 = vpop.xlane.xlu0 %402
    %v404 = vsel %vm69, %v400, 0.0
    %405 = vadd.xlane.f32.xlu0 %v404
    %v406 = vpop.xlane.xlu0 %405
    %v407 = vrsqrt.pop %v403
    %v408 = vmul.f32 %v403, %v407
    %vm409 = vcmp.eq.f32.partialorder %v403, inf
    %v410 = vsel %vm409, %v403, %v408
    %vm411 = vcmp.eq.f32.partialorder %v403, 0.0
    %v412 = vand.u32 %v403, 2147483648
    %v413 = vsel %vm411, %v412, %v410
    %v414 = vrsqrt.pop %v406
    %v415 = vmul.f32 %v406, %v414
    %vm416 = vcmp.eq.f32.partialorder %v406, inf
    %v417 = vsel %vm416, %v406, %v415
    %vm418 = vcmp.eq.f32.partialorder %v406, 0.0
    %v419 = vand.u32 %v406, 2147483648
    %v420 = vsel %vm418, %v419, %v417
    %v421 = vadd.f32 %v413, 1e-12
    %v422 = vadd.f32 %v420, 1e-12
    %v423 = vrcp.pop %v421
    %v424 = vmul.f32 %v323, %v423
    %v425 = vrcp.pop %v422
    %v426 = vmul.f32 %v396, %v425
    %v429 = vrot.slane %v426, 7
    %vm430 = vcmask 1041409
    %v431 = vsel %vm430, %v429, %v424
    %v433 = vrot.slane %v424, 1
    %v434 = vsel %vm430, %v426, %v433
    %435 = vrot.lane.b32.xlu0 %v434, 32
    %v436 = vpop.permute.xlu0 %435
    %v438 = vrot.slane %v424, 2
    %v439 = vrot.slane %v426, 1
    %v440 = vsel %vm430, %v439, %v438
    %441 = vrot.lane.b32.xlu0 %v440, 64
    %v442 = vpop.permute.xlu0 %441
    %v444 = vrot.slane %v424, 3
    %v445 = vrot.slane %v426, 2
    %v446 = vsel %vm430, %v445, %v444
    %447 = vrot.lane.b32.xlu0 %v446, 96
    %v448 = vpop.permute.xlu0 %447
    %v450 = vrot.slane %v424, 4
    %v451 = vrot.slane %v426, 3
    %v452 = vsel %vm430, %v451, %v450
    %v454 = vrot.slane %v424, 5
    %v455 = vrot.slane %v426, 4
    %v456 = vsel %vm430, %v455, %v454
    %457 = vrot.lane.b32.xlu0 %v456, 32
    %v458 = vpop.permute.xlu0 %457
    %v460 = vrot.slane %v424, 6
    %v461 = vrot.slane %v426, 5
    %v462 = vsel %vm430, %v461, %v460
    %463 = vrot.lane.b32.xlu0 %v462, 64
    %v464 = vpop.permute.xlu0 %463
    %v466 = vrot.slane %v424, 7
    %v467 = vrot.slane %v426, 6
    %v468 = vsel %vm430, %v467, %v466
    %469 = vrot.lane.b32.xlu0 %v468, 96
    %v470 = vpop.permute.xlu0 %469
    %v472 = vsel %vm69, %v431, %v436
    %vm473 = vcmask 523264
    %v474 = vsel %vm473, %v472, %v442
    %vm475 = vcmask 785408
    %v476 = vsel %vm475, %v474, %v448
    %v477 = vsel %vm69, %v452, %v458
    %v478 = vsel %vm473, %v477, %v464
    %v479 = vsel %vm475, %v478, %v470
    %v480 = vrot.slane %v252, 7
    %v481 = vsel %vm430, %v480, %v250
    %v483 = vrot.slane %v250, 1
    %v484 = vsel %vm430, %v252, %v483
    %485 = vrot.lane.b32.xlu0 %v484, 16
    %v486 = vpop.permute.xlu0 %485
    %v488 = vrot.slane %v250, 2
    %v489 = vrot.slane %v252, 1
    %v490 = vsel %vm430, %v489, %v488
    %491 = vrot.lane.b32.xlu0 %v490, 32
    %v492 = vpop.permute.xlu0 %491
    %v494 = vrot.slane %v250, 3
    %v495 = vrot.slane %v252, 2
    %v496 = vsel %vm430, %v495, %v494
    %497 = vrot.lane.b32.xlu0 %v496, 48
    %v498 = vpop.permute.xlu0 %497
    %v500 = vrot.slane %v250, 4
    %v501 = vrot.slane %v252, 3
    %v502 = vsel %vm430, %v501, %v500
    %503 = vrot.lane.b32.xlu0 %v502, 64
    %v504 = vpop.permute.xlu0 %503
    %v506 = vrot.slane %v250, 5
    %v507 = vrot.slane %v252, 4
    %v508 = vsel %vm430, %v507, %v506
    %509 = vrot.lane.b32.xlu0 %v508, 80
    %v510 = vpop.permute.xlu0 %509
    %v512 = vrot.slane %v250, 6
    %v513 = vrot.slane %v252, 5
    %v514 = vsel %vm430, %v513, %v512
    %515 = vrot.lane.b32.xlu0 %v514, 96
    %v516 = vpop.permute.xlu0 %515
    %v518 = vrot.slane %v250, 7
    %v519 = vrot.slane %v252, 6
    %v520 = vsel %vm430, %v519, %v518
    %521 = vrot.lane.b32.xlu0 %v520, 112
    %v522 = vpop.permute.xlu0 %521
    %v524 = vsel %vm230, %v481, %v486
    %v525 = vsel %vm69, %v524, %v492
    %vm526 = vcmask 392192
    %v527 = vsel %vm526, %v525, %v498
    %v528 = vsel %vm473, %v527, %v504
    %vm529 = vcmask 654336
    %v530 = vsel %vm529, %v528, %v510
    %v531 = vsel %vm475, %v530, %v516
    %vm532 = vcmask 916480
    %v533 = vsel %vm532, %v531, %v522
    %v536 = vcombine.low %v476, %v479
    %v538 = vunpack.c.l.s4 1983009808
    %v539 = vunpack.c.0.s8 %v538
    %v540 = vlaneseq
    %v541 = vshrl.u32 %v540, 7
    %v542 = vsub.s32 %v539, %v541
    %v543 = vrot.slane %v536, %v542
    %545 = vst [vmem:[#allocation8] sm:$0xf] %v543
    %546 = vst [vmem:[#allocation9] sm:$0x3] %v533
    // Predicated region
    $region26: #{tpu_custom_call.1} parent=1 // pred_check
      _
    $region27: #{tpu_custom_call.1} parent=1 // pred_check_branch
      %548 = sbr.rel (0) target = $region29
    $region28: #{tpu_custom_call.1} parent=1 // pred_region
      %s550 = ssub.s32 64, 64
      %551 = vsyncadd [#allocation4], %s550
      %s553 = sshll.u32 [#allocation8], 4
      %s554 = int_to_ptr.vmem [resolvable:$true] %s553
      %556 = dma.vmem_to_hbm [thread:$0]  %s554, 64, %s3, [#allocation4]
    $region29: #{tpu_custom_call.1} parent=1 // pred_fallthru
      _
    // Predicated region
    $region30: #{tpu_custom_call.1} parent=1 // pred_check
      _
    $region31: #{tpu_custom_call.1} parent=1 // pred_check_branch
      %558 = sbr.rel (0) target = $region33
    $region32: #{tpu_custom_call.1} parent=1 // pred_region
      %s560 = ssub.s32 32, 32
      %561 = vsyncadd [#allocation10], %s560
      %s563 = sshll.u32 [#allocation9], 4
      %s564 = int_to_ptr.vmem [resolvable:$true] %s563
      %566 = dma.vmem_to_hbm [thread:$0]  %s564, 32, %s4, [#allocation10]
    $region33: #{tpu_custom_call.1} parent=1 // pred_fallthru
      _
    // Predicated region
    $region34: #{tpu_custom_call.1} parent=1 // pred_check
      _
    $region35: #{tpu_custom_call.1} parent=1 // pred_check_branch
      %568 = sbr.rel (0) target = $region37
    $region36: #{tpu_custom_call.1} parent=1 // pred_region
      %569 = dma.done [#allocation4], 64
    $region37: #{tpu_custom_call.1} parent=1 // pred_fallthru
      _
    // Predicated region
    $region38: #{tpu_custom_call.1} parent=1 // pred_check
      _
    $region39: #{tpu_custom_call.1} parent=1 // pred_check_branch
      %571 = sbr.rel (0) target = $region41
    $region40: #{tpu_custom_call.1} parent=1 // pred_region
      %572 = dma.done [#allocation10], 32
    $region41: #{tpu_custom_call.1} parent=1 // pred_fallthru
      _
    %573 = vsyncpa [#allocation3], 1
    %574 = vsyncpa [#allocation6], 1
    %575 = vsyncpa [#allocation4], 1
    %576 = vsyncpa [#allocation10], 1

</llo_original>
